<compile_context>
chip_gen: v6e
topology: v6e:2x2x1
jax: 0.10.0
libtpu: 0.0.40
codegen_flags: <defaults>
</compile_context>

<pallas_src>
import jax
import jax.numpy as jnp
import numpy as np
from jax.experimental import pallas as pl
from jax.experimental.pallas import tpu as pltpu


_EPS = 1e-5
_LANE_TILE = 512          # lane-axis tile (multiple of 128) used when B*C is large


def _forecast_kernel(x_ref, w_ref, b_ref, o_ref):
    # x_ref: (L, tn)  time on sublanes, flattened batch*channel on lanes
    # w_ref: (P, L)   fused effective weight (grid-invariant)
    # b_ref: (P, 1)   fused effective bias (broadcasts over lanes)
    # o_ref: (P, tn)
    x = x_ref[...]

    # per-(batch, channel) instance-norm statistics over time (sublane reduce)
    mean = jnp.mean(x, axis=0, keepdims=True)            # (1, tn)
    xc = x - mean
    var = jnp.mean(xc * xc, axis=0, keepdims=True)       # unbiased=False
    stdev = jnp.sqrt(var + _EPS)

    # normalize / de-normalize cancel:  (W @ (xc/std)) * std == W @ xc,
    # so the only per-element pass over the big tile is the centering above.
    y = jnp.dot(w_ref[...], xc, preferred_element_type=jnp.float32)   # (P, tn)
    o_ref[...] = y + b_ref[...] * stdev + mean


def two_linear_forecast(x_enc, wc_t, bc, wf_t, bf):
    """x_enc: [B, L, C] f32 -> [B, P, C] f32  (== Model.forecast / forward).

    wc_t: (L, P)     coarse_linear weight, transposed (in x out)
    bc:   (P,)       coarse_linear bias
    wf_t: (L+P, P)   fine_linear weight, transposed
    bf:   (P,)       fine_linear bias
    """
    B, L, C = x_enc.shape
    P = wc_t.shape[1]
    N = B * C

    # --- exact algebraic fusion of the two linears (tiny, host-side) -------
    #   y   = xn @ wc_t + bc
    #   out = concat(xn, y) @ wf_t + bf + y
    #       = xn @ (wf_t[:L] + wc_t @ (wf_t[L:] + I)) + bc @ (wf_t[L:] + I) + bf
    hi = jax.lax.Precision.HIGHEST
    wf2p = wf_t[L:].astype(jnp.float32) + jnp.eye(P, dtype=jnp.float32)     # (P, P)
    w_eff = wf_t[:L].astype(jnp.float32) + jnp.dot(
        wc_t.astype(jnp.float32), wf2p, precision=hi)                        # (L, P)
    b_eff = jnp.dot(bc.astype(jnp.float32), wf2p, precision=hi) \
        + bf.astype(jnp.float32)                                             # (P,)
    w_eff_t = w_eff.T                                     # (P, L)
    b_eff2 = b_eff.reshape(P, 1)                          # (P, 1)

    # --- lane-dense view: time on sublanes, flattened (b, c) on lanes -------
    x2 = jnp.transpose(x_enc.astype(jnp.float32), (1, 0, 2)).reshape(L, N)

    if N <= _LANE_TILE:
        tn, n_pad = N, N               # single grid step, full-extent block
    else:
        tn = _LANE_TILE
        n_pad = pl.cdiv(N, tn) * tn
        if n_pad != N:                 # zero-pad ragged lane tile (sliced off below)
            x2 = jnp.pad(x2, ((0, 0), (0, n_pad - N)))
    grid_n = n_pad // tn

    # Raise the scoped-VMEM limit only when the tiles need it (matters on
    # v5e's 16 MiB default; never triggers at the small test shapes).
    vmem_est = 4 * (3 * L * tn + 3 * P * tn + 2 * P * L + 2 * P)
    cp_kwargs = dict(dimension_semantics=("parallel",))
    if vmem_est > 12 * 1024 * 1024:
        cp_kwargs["vmem_limit_bytes"] = int(min(3 * vmem_est, 64 * 1024 * 1024))

    out2 = pl.pallas_call(
        _forecast_kernel,
        out_shape=jax.ShapeDtypeStruct((P, n_pad), jnp.float32),
        grid_spec=pltpu.PrefetchScalarGridSpec(
            num_scalar_prefetch=0,
            grid=(grid_n,),
            in_specs=[
                # lane tile of x in the flattened [L, B*C] layout
                pl.BlockSpec((L, tn), lambda n: (0, n)),
                # grid-invariant fused weight / bias: constant index map, so
                # the DMA happens once and is not re-fetched per lane tile
                pl.BlockSpec((P, L), lambda n: (0, 0)),
                pl.BlockSpec((P, 1), lambda n: (0, 0)),
            ],
            out_specs=pl.BlockSpec((P, tn), lambda n: (0, n)),
        ),
        compiler_params=pltpu.CompilerParams(**cp_kwargs),
    )(x2, w_eff_t, b_eff2)

    # back to the module's native [B, P, C] layout
    return jnp.transpose(out2[:, :N].reshape(P, B, C), (1, 0, 2))


def _reference_np(x_enc, wc_t, bc, wf_t, bf):
    """float64 numpy re-implementation of Model.forecast (un-fused)."""
    x = np.asarray(x_enc, np.float64)
    wc = np.asarray(wc_t, np.float64)
    wf = np.asarray(wf_t, np.float64)
    bcn = np.asarray(bc, np.float64)
    bfn = np.asarray(bf, np.float64)
    mean = x.mean(axis=1, keepdims=True)
    xc = x - mean
    std = np.sqrt(xc.var(axis=1, keepdims=True) + 1e-5)   # ddof=0 == unbiased=False
    xn = xc / std
    xt = np.transpose(xn, (0, 2, 1))                       # (B, C, L)
    y = xt @ wc + bcn                                      # (B, C, P)
    xy = np.concatenate([xt, y], axis=-1)                  # (B, C, L+P)
    y = xy @ wf + bfn + y                                  # (B, C, P)
    y = np.transpose(y, (0, 2, 1))                         # (B, P, C)
    return y * std[:, 0:1, :] + mean[:, 0:1, :]


if __name__ == "__main__":
    # small shapes consistent with the module's forecast path
    B, seq_len, pred_len, channels = 2, 16, 8, 4

    key = jax.random.PRNGKey(0)
    kx, kbc, kbf, kwf = jax.random.split(key, 4)

    x_enc = jax.random.normal(kx, (B, seq_len, channels), dtype=jnp.float32)

    # parameters matching the module's init:
    #   coarse_linear.weight = (1/seq_len) * ones([pred_len, seq_len])
    #   fine_linear.weight   = zeros([pred_len, seq_len + pred_len])
    #   biases keep nn.Linear default U(-1/sqrt(fan_in), 1/sqrt(fan_in)) init
    wc_t = (1.0 / seq_len) * jnp.ones((seq_len, pred_len), dtype=jnp.float32)
    wf_t = jnp.zeros((seq_len + pred_len, pred_len), dtype=jnp.float32)
    bc_bound = 1.0 / np.sqrt(seq_len)
    bf_bound = 1.0 / np.sqrt(seq_len + pred_len)
    bc = jax.random.uniform(kbc, (pred_len,), jnp.float32, -bc_bound, bc_bound)
    bf = jax.random.uniform(kbf, (pred_len,), jnp.float32, -bf_bound, bf_bound)

    out = jax.block_until_ready(two_linear_forecast(x_enc, wc_t, bc, wf_t, bf))
    assert out.shape == (B, pred_len, channels)
    np.testing.assert_allclose(np.asarray(out),
                               _reference_np(x_enc, wc_t, bc, wf_t, bf),
                               rtol=1e-4, atol=1e-5)

    # non-zero fine weight so the algebraic two-linear fusion is exercised
    # (the module's own init zeroes fine_linear.weight out)
    wf_rand = 0.1 * jax.random.normal(kwf, (seq_len + pred_len, pred_len),
                                      dtype=jnp.float32)
    out2 = jax.block_until_ready(two_linear_forecast(x_enc, wc_t, bc, wf_rand, bf))
    np.testing.assert_allclose(np.asarray(out2),
                               _reference_np(x_enc, wc_t, bc, wf_rand, bf),
                               rtol=1e-4, atol=1e-5)

    # moderate shape that exercises the multi-tile (padded) lane grid:
    # N = B*C = 768 -> two 512-lane tiles, last one zero-padded
    B2, L2, P2, C2 = 8, 48, 24, 96
    ks = jax.random.split(key, 6)
    x_big = jax.random.normal(ks[0], (B2, L2, C2), dtype=jnp.float32)
    wc2 = jax.random.normal(ks[1], (L2, P2), dtype=jnp.float32) / np.sqrt(L2)
    wf2 = jax.random.normal(ks[2], (L2 + P2, P2), dtype=jnp.float32) / np.sqrt(L2 + P2)
    bc2 = 0.1 * jax.random.normal(ks[3], (P2,), dtype=jnp.float32)
    bf2 = 0.1 * jax.random.normal(ks[4], (P2,), dtype=jnp.float32)
    out3 = jax.block_until_ready(two_linear_forecast(x_big, wc2, bc2, wf2, bf2))
    assert out3.shape == (B2, P2, C2)
    np.testing.assert_allclose(np.asarray(out3),
                               _reference_np(x_big, wc2, bc2, wf2, bf2),
                               rtol=2e-4, atol=2e-5)

    print("KERNEL_OK")
</pallas_src>

<mosaic_0001>
module attributes {stable_mosaic.version = 11 : i64} {
  func.func @_forecast_kernel(%arg0: i32, %arg1: memref<16x8xf32, #tpu.memory_space<vmem>>, %arg2: memref<8x16xf32, #tpu.memory_space<vmem>>, %arg3: memref<8x1xf32, #tpu.memory_space<vmem>>, %arg4: memref<8x8xf32, #tpu.memory_space<vmem>>) attributes {dimension_semantics = [#tpu.dimension_semantics<parallel>], iteration_bounds = array<i64: 1>, scalar_prefetch = 0 : i64, scratch_operands = 0 : i64, tpu.core_type = #tpu.core_type<tc>, window_params = [{transform_indices = @transform_0, window_bounds = array<i64: 16, 8>}, {pipeline_mode = #tpu.pipeline_mode<synchronous>, transform_indices = @transform_1, window_bounds = array<i64: 8, 16>}, {pipeline_mode = #tpu.pipeline_mode<synchronous>, transform_indices = @transform_2, window_bounds = array<i64: 8, 1>}, {transform_indices = @transform_3, window_bounds = array<i64: 8, 8>}]} {
    %c0 = arith.constant 0 : index
    %c0_0 = arith.constant 0 : index
    %0 = vector.load %arg1[%c0, %c0_0] : memref<16x8xf32, #tpu.memory_space<vmem>>, vector<16x8xf32>
    %cst = arith.constant dense<0.000000e+00> : vector<8xf32>
    %1 = vector.multi_reduction <add>, %0, %cst [0] : vector<16x8xf32> to vector<8xf32>
    %2 = vector.shape_cast %1 : vector<8xf32> to vector<1x8xf32>
    %cst_1 = arith.constant 1.600000e+01 : f32
    %3 = vector.broadcast %cst_1 : f32 to vector<1x8xf32>
    %4 = arith.divf %2, %3 : vector<1x8xf32>
    %5 = vector.broadcast %4 : vector<1x8xf32> to vector<16x8xf32>
    %6 = arith.subf %0, %5 : vector<16x8xf32>
    %7 = arith.mulf %6, %6 : vector<16x8xf32>
    %cst_2 = arith.constant dense<0.000000e+00> : vector<8xf32>
    %8 = vector.multi_reduction <add>, %7, %cst_2 [0] : vector<16x8xf32> to vector<8xf32>
    %9 = vector.shape_cast %8 : vector<8xf32> to vector<1x8xf32>
    %cst_3 = arith.constant 1.600000e+01 : f32
    %10 = vector.broadcast %cst_3 : f32 to vector<1x8xf32>
    %11 = arith.divf %9, %10 : vector<1x8xf32>
    %cst_4 = arith.constant 9.99999974E-6 : f32
    %12 = vector.broadcast %cst_4 : f32 to vector<1x8xf32>
    %13 = arith.addf %11, %12 : vector<1x8xf32>
    %14 = math.sqrt %13 : vector<1x8xf32>
    %c0_5 = arith.constant 0 : index
    %c0_6 = arith.constant 0 : index
    %15 = vector.load %arg2[%c0_5, %c0_6] : memref<8x16xf32, #tpu.memory_space<vmem>>, vector<8x16xf32>
    %cst_7 = arith.constant dense<0.000000e+00> : vector<8x8xf32>
    %16 = tpu.matmul %15, %6, %cst_7 {dimension_numbers = #tpu.dot_dimension_numbers<[1], [0], [0], [1], [0, 0, 1, 1], [], []>} : vector<8x16xf32>, vector<16x8xf32>, vector<8x8xf32> -> vector<8x8xf32>
    %c0_8 = arith.constant 0 : index
    %c0_9 = arith.constant 0 : index
    %17 = vector.load %arg3[%c0_8, %c0_9] : memref<8x1xf32, #tpu.memory_space<vmem>>, vector<8x1xf32>
    %18 = vector.broadcast %17 : vector<8x1xf32> to vector<8x8xf32>
    %19 = vector.broadcast %14 : vector<1x8xf32> to vector<8x8xf32>
    %20 = arith.mulf %18, %19 : vector<8x8xf32>
    %21 = arith.addf %16, %20 : vector<8x8xf32>
    %22 = vector.broadcast %4 : vector<1x8xf32> to vector<8x8xf32>
    %23 = arith.addf %21, %22 : vector<8x8xf32>
    %c0_10 = arith.constant 0 : index
    %c0_11 = arith.constant 0 : index
    %24 = vector.load %arg4[%c0_10, %c0_11] : memref<8x8xf32, #tpu.memory_space<vmem>>, vector<8x8xf32>
    tpu.vector_store %arg4[%c0_10, %c0_11], %23 {strides = array<i32>} : memref<8x8xf32, #tpu.memory_space<vmem>>, vector<8x8xf32>,
    return
  }
  func.func @transform_0(%arg0: i32) -> (i32, i32) {
    %c0_i32 = arith.constant 0 : i32
    %c0_i32_0 = arith.constant 0 : i32
    return %c0_i32, %arg0 : i32, i32
  }
  func.func @transform_1(%arg0: i32) -> (i32, i32) {
    %c0_i32 = arith.constant 0 : i32
    %c0_i32_0 = arith.constant 0 : i32
    %c0_i32_1 = arith.constant 0 : i32
    return %c0_i32, %c0_i32_0 : i32, i32
  }
  func.func @transform_2(%arg0: i32) -> (i32, i32) {
    %c0_i32 = arith.constant 0 : i32
    %c0_i32_0 = arith.constant 0 : i32
    %c0_i32_1 = arith.constant 0 : i32
    return %c0_i32, %c0_i32_0 : i32, i32
  }
  func.func @transform_3(%arg0: i32) -> (i32, i32) {
    %c0_i32 = arith.constant 0 : i32
    %c0_i32_0 = arith.constant 0 : i32
    return %c0_i32, %arg0 : i32, i32
  }
}

</mosaic_0001>

<llo_original>
// kernel: tpu_custom_call.1
$region0: #{tpu_custom_call.1}
  #allocation0 [shape = 'u32[]', space=smem, size = 0x4, offset = 0x4, fixed_abs, tag = 'smem constant byte address 0x4 - core index']
  #allocation1 [shape = 'u32[144,128]{1,0:T(1,128)}', space=vmem, size = 0x12000, scoped, tag = 'internal scratch']
  %s0 = inlined_call_operand.vmem [shape: f32[16,8], index: 0, kind: input, shape index: {}]
  %s1 = inlined_call_operand.vmem [shape: f32[8,16], index: 1, kind: input, shape index: {}]
  %s2 = inlined_call_operand.vmem [shape: f32[8,1], index: 2, kind: input, shape index: {}]
  %s3 = inlined_call_operand.hbm [shape: f32[8,8], index: 3, kind: output, shape index: {}]
  %s4 = sld [smem:[#allocation0]]
  $region22: #{tpu_custom_call.1} parent=0
    _
  %s6 = ssub.s32 1, %s4
  %s7 = scalar_select 0, %s6, %s4
  $region1: #{tpu_custom_call.1} parent=0
    #allocation2 [shape = 'u8[4096]{0}', space=vmem, size = 0x1000, scoped, tag = 'output window, operand 0, single buffered']
    #allocation3 [shape = 's32[1]{0}', space=sflag, size = 0x4, scoped, tag = 'scoped memory for tpu_custom_call.1']
    %8 = vsyncpa [#allocation3], 0
    // Predicated region
    $region2: #{tpu_custom_call.1} parent=1 // pred_check
      _
    $region3: #{tpu_custom_call.1} parent=1 // pred_check_branch
      %10 = sbr.rel (0) target = $region5
    $region4: #{tpu_custom_call.1} parent=1 // pred_region
      _
    $region5: #{tpu_custom_call.1} parent=1 // pred_fallthru
      _
    // Predicated region
    $region6: #{tpu_custom_call.1} parent=1 // pred_check
      _
    $region7: #{tpu_custom_call.1} parent=1 // pred_check_branch
      %12 = sbr.rel (0) target = $region9
    $region8: #{tpu_custom_call.1} parent=1 // pred_region
      _
    $region9: #{tpu_custom_call.1} parent=1 // pred_fallthru
      _
    // Predicated region
    $region10: #{tpu_custom_call.1} parent=1 // pred_check
      _
    $region11: #{tpu_custom_call.1} parent=1 // pred_check_branch
      %14 = sbr.rel (0) target = $region13
    $region12: #{tpu_custom_call.1} parent=1 // pred_region
      _
    $region13: #{tpu_custom_call.1} parent=1 // pred_fallthru
      _
    %v15 = vld [vmem:[%s0] sm:$0xff]
    %v16 = vld [vmem:[%s0 + $0x8] sm:$0xff]
    %vm17 = vcmask 64512
    %v18 = vsel %vm17, %v15, 0.0
    %v19 = vsel %vm17, %v16, 0.0
    %v20 = vadd.f32 %v18, %v19
    %v21 = vrot.slane %v20, 4
    %v22 = vadd.f32 %v20, %v21
    %v23 = vrot.slane %v22, 2
    %v24 = vadd.f32 %v22, %v23
    %v25 = vrot.slane %v24, 1
    %v26 = vadd.f32 %v24, %v25
    %v27 = vrcp.pop 16.0
    %v28 = vmul.f32 %v26, %v27
    %v29 = vsub.f32 %v15, %v28
    %v30 = vsub.f32 %v16, %v28
    %v31 = vmul.f32 %v29, %v29
    %v32 = vmul.f32 %v30, %v30
    %v33 = vsel %vm17, %v31, 0.0
    %v34 = vsel %vm17, %v32, 0.0
    %v35 = vadd.f32 %v33, %v34
    %v36 = vrot.slane %v35, 4
    %v37 = vadd.f32 %v35, %v36
    %v38 = vrot.slane %v37, 2
    %v39 = vadd.f32 %v37, %v38
    %v40 = vrot.slane %v39, 1
    %v41 = vadd.f32 %v39, %v40
    %v42 = vmul.f32 %v41, %v27
    %v43 = vadd.f32 %v42, 1e-05
    %v44 = vrsqrt.pop %v43
    %v45 = vmul.f32 %v43, %v44
    %vm46 = vcmp.eq.f32.partialorder %v43, inf
    %v47 = vsel %vm46, %v43, %v45
    %vm48 = vcmp.eq.f32.partialorder %v43, 0.0
    %v49 = vand.u32 %v43, 2147483648
    %v50 = vsel %vm48, %v49, %v47
    %v51 = vld [vmem:[%s1] sm:$0xff]
    %v52 = vld [vmem:[%s2] sm:$0xff]
    %54 = vset.pattern.permute.xlu0 0
    %55 = vperm.xlu0 %54, %v52
    %v56 = vpop.permute.xlu0 %55
    %v58 = vmul.f32 %v56, %v50
    %vm59 = vcmask 130048
    %v61 = vsel %vm59, %v51, 0
    %63 = vmatprep.subr.mxu0 0.0
    %64 = vmatpush1.msra.mxu0 0.0
    %65 = vmatprep.subr.mxu0 0.0
    %66 = vmatpush1.msra.mxu0 0.0
    %67 = vmatprep.subr.mxu0 0.0
    %68 = vmatpush1.msra.mxu0 0.0
    %69 = vmatprep.subr.mxu0 0.0
    %70 = vmatpush1.msra.mxu0 0.0
    %71 = vmatprep.subr.mxu0 0.0
    %72 = vmatpush1.msra.mxu0 0.0
    %73 = vmatprep.subr.mxu0 0.0
    %74 = vmatpush1.msra.mxu0 0.0
    %75 = vmatprep.subr.mxu0 0.0
    %76 = vmatpush1.msra.mxu0 0.0
    %77 = vmatprep.subr.mxu0 0.0
    %78 = vmatpush1.msra.mxu0 0.0
    %79 = vmatprep.subr.mxu0 0.0
    %80 = vmatpush1.msra.mxu0 0.0
    %81 = vmatprep.subr.mxu0 0.0
    %82 = vmatpush1.msra.mxu0 0.0
    %83 = vmatprep.subr.mxu0 0.0
    %84 = vmatpush1.msra.mxu0 0.0
    %85 = vmatprep.subr.mxu0 0.0
    %86 = vmatpush1.msra.mxu0 0.0
    %87 = vmatprep.subr.mxu0 0.0
    %88 = vmatpush1.msra.mxu0 0.0
    %89 = vmatprep.subr.mxu0 0.0
    %90 = vmatpush1.msra.mxu0 0.0
    %91 = vmatprep.subr.mxu0 0.0
    %92 = vmatpush1.msra.mxu0 %v30
    %93 = vmatprep.subr.mxu0 0.0
    %94 = vmatpush1.msra.mxu0 %v29
    %95 = vmatprep.subr.mxu0 0.0
    %96 = vmatpush2.msra.mxu0 0.0
    %97 = vmatprep.subr.mxu0 0.0
    %98 = vmatpush2.msra.mxu0 0.0
    %99 = vmatprep.subr.mxu0 0.0
    %100 = vmatpush2.msra.mxu0 0.0
    %101 = vmatprep.subr.mxu0 0.0
    %102 = vmatpush2.msra.mxu0 0.0
    %103 = vmatprep.subr.mxu0 0.0
    %104 = vmatpush2.msra.mxu0 0.0
    %105 = vmatprep.subr.mxu0 0.0
    %106 = vmatpush2.msra.mxu0 0.0
    %107 = vmatprep.subr.mxu0 0.0
    %108 = vmatpush2.msra.mxu0 0.0
    %109 = vmatprep.subr.mxu0 0.0
    %110 = vmatpush2.msra.mxu0 0.0
    %111 = vmatprep.subr.mxu0 0.0
    %112 = vmatpush2.msra.mxu0 0.0
    %113 = vmatprep.subr.mxu0 0.0
    %114 = vmatpush2.msra.mxu0 0.0
    %115 = vmatprep.subr.mxu0 0.0
    %116 = vmatpush2.msra.mxu0 0.0
    %117 = vmatprep.subr.mxu0 0.0
    %118 = vmatpush2.msra.mxu0 0.0
    %119 = vmatprep.subr.mxu0 0.0
    %120 = vmatpush2.msra.mxu0 0.0
    %121 = vmatprep.subr.mxu0 0.0
    %122 = vmatpush2.msra.mxu0 0.0
    %123 = vmatprep.subr.mxu0 0.0
    %124 = vmatpush2.msra.mxu0 0.0
    %125 = vmatprep.subr.mxu0 0.0
    %126 = vmatpush2.msra.mxu0 0.0
    %127 = vmatprep.mubr.f32.mxu0 0.0
    %128 = vmatmul.mubr.f32.gmra.mxu0 %v61
    %v129 = vpop.f32.mrf.mxu0
    %v130 = vadd.f32 %v58, %v129
    %v131 = vpop.f32.mrf.mxu0
    %132 = vdwg.mxu0
    %v133 = vadd.f32 %v130, %v28
    %134 = vst.msk [vmem:[#allocation2] sm:$0xff] %vm17, %v133
    // Predicated region
    $region14: #{tpu_custom_call.1} parent=1 // pred_check
      _
    $region15: #{tpu_custom_call.1} parent=1 // pred_check_branch
      %136 = sbr.rel (0) target = $region17
    $region16: #{tpu_custom_call.1} parent=1 // pred_region
      %s138 = ssub.s32 128, 128
      %139 = vsyncadd [#allocation3], %s138
      %s141 = sshll.u32 [#allocation2], 4
      %s142 = int_to_ptr.vmem [resolvable:$true] %s141
      %144 = dma.vmem_to_hbm [thread:$0]  %s142, 128, %s3, [#allocation3]
    $region17: #{tpu_custom_call.1} parent=1 // pred_fallthru
      _
    // Predicated region
    $region18: #{tpu_custom_call.1} parent=1 // pred_check
      _
    $region19: #{tpu_custom_call.1} parent=1 // pred_check_branch
      %146 = sbr.rel (0) target = $region21
    $region20: #{tpu_custom_call.1} parent=1 // pred_region
      %147 = dma.done [#allocation3], 128
    $region21: #{tpu_custom_call.1} parent=1 // pred_fallthru
      _
    %148 = vsyncpa [#allocation3], 1

</llo_original>
